<compile_context>
chip_gen: v6e
topology: v6e:2x2x1
jax: 0.10.0
libtpu: 0.0.40
codegen_flags: <defaults>
</compile_context>

<pallas_src>
import jax
import jax.numpy as jnp
from jax import lax
from jax.experimental import pallas as pl
from jax.experimental.pallas import tpu as pltpu


def _gelu_exact(x):
    # PyTorch nn.GELU() default is the exact erf formulation (done in f32 here).
    return 0.5 * x * (1.0 + lax.erf(x * (1.0 / jnp.sqrt(2.0).astype(x.dtype))))


def mlp_kernel(x_ref, w1_ref, b1_ref, w2_ref, b2_ref, o_ref, acc_ref):
    # x_ref:  (tm, E)  bf16 row tile
    # w1_ref: (E, th)  bf16 chunk of W1, b1_ref: (1, th) f32 chunk of b1
    # w2_ref: (th, E)  bf16 chunk of W2, b2_ref: (1, E)  f32
    # o_ref:  (tm, E)  output tile (f32)
    # acc_ref:(tm, E)  f32 accumulator (persists across the H-chunk grid axis)
    k = pl.program_id(1)

    @pl.when(k == 0)
    def _():
        acc_ref[...] = jnp.zeros_like(acc_ref)

    # First matmul chunk: (tm, E) @ (E, th) -> f32 (tm, th)
    h = jnp.dot(x_ref[...], w1_ref[...], preferred_element_type=jnp.float32)
    h = h + b1_ref[...]
    h = _gelu_exact(h)

    # Second matmul chunk, accumulate: (tm, th) @ (th, E) -> f32 (tm, E)
    acc_ref[...] += jnp.dot(h.astype(jnp.bfloat16), w2_ref[...],
                            preferred_element_type=jnp.float32)

    @pl.when(k == pl.num_programs(1) - 1)
    def _():
        o_ref[...] = (acc_ref[...] + b2_ref[...]).astype(o_ref.dtype)


def _round_up(x, m):
    return ((x + m - 1) // m) * m


def _vmem_bytes(tm, th, E):
    bf16, f32 = 2, 4
    # Double-buffered pipelined tiles + resident accumulator.
    x_tile = tm * E * bf16 * 2
    w1_tile = E * th * bf16 * 2
    w2_tile = th * E * bf16 * 2
    b1_tile = max(th, 128) * f32 * 2
    b2_tile = max(E, 128) * f32 * 2
    out_tile = tm * E * f32 * 2
    acc = tm * E * f32
    return x_tile + w1_tile + w2_tile + b1_tile + b2_tile + out_tile + acc


@jax.jit
def mlp_forward(x, w1, b1, w2, b2):
    batch, seq, E = x.shape
    H = w1.shape[1]
    N = batch * seq

    # Lane-friendly padding.
    E_pad = _round_up(E, 128)
    H_pad1 = _round_up(H, 128)
    th = min(512, H_pad1)
    H_pad = _round_up(H_pad1, th)

    # Row tile: as large as 256, multiple of 8, shrink if VMEM budget exceeded.
    tm = min(256, _round_up(N, 8))
    budget = 48 * 1024 * 1024
    while _vmem_bytes(tm, th, E_pad) > budget and th > 128:
        th = max(128, th // 2)
        H_pad = _round_up(H_pad1, th)
    while _vmem_bytes(tm, th, E_pad) > budget and tm > 64:
        tm //= 2
    N_pad = _round_up(N, tm)

    # Prepare operands: flatten, zero-pad, cast matmul operands to bf16.
    x2d = x.reshape(N, E)
    x2d = jnp.pad(x2d, ((0, N_pad - N), (0, E_pad - E))).astype(jnp.bfloat16)
    w1p = jnp.pad(w1, ((0, E_pad - E), (0, H_pad - H))).astype(jnp.bfloat16)
    w2p = jnp.pad(w2, ((0, H_pad - H), (0, E_pad - E))).astype(jnp.bfloat16)
    b1p = jnp.pad(b1, (0, H_pad - H)).astype(jnp.float32).reshape(1, H_pad)
    b2p = jnp.pad(b2, (0, E_pad - E)).astype(jnp.float32).reshape(1, E_pad)

    grid = (N_pad // tm, H_pad // th)

    need = _vmem_bytes(tm, th, E_pad)
    vmem_limit = min(max(int(need * 1.5) + (8 << 20), 32 << 20), 60 << 20)

    cost = pl.CostEstimate(
        flops=4 * N_pad * E_pad * H_pad,
        transcendentals=N_pad * H_pad,
        bytes_accessed=(N_pad * E_pad * 2          # x (bf16)
                        + 2 * E_pad * H_pad * 2    # W1 + W2 (bf16)
                        + N_pad * E_pad * 4),      # output (f32)
    )

    out2d = pl.pallas_call(
        mlp_kernel,
        out_shape=jax.ShapeDtypeStruct((N_pad, E_pad), jnp.float32),
        grid_spec=pltpu.PrefetchScalarGridSpec(
            num_scalar_prefetch=0,
            grid=grid,
            in_specs=[
                pl.BlockSpec((tm, E_pad), lambda i, k: (i, 0)),   # x row tile
                pl.BlockSpec((E_pad, th), lambda i, k: (0, k)),   # W1 chunk
                pl.BlockSpec((1, th), lambda i, k: (0, k)),       # b1 chunk
                pl.BlockSpec((th, E_pad), lambda i, k: (k, 0)),   # W2 chunk
                pl.BlockSpec((1, E_pad), lambda i, k: (0, 0)),    # b2
            ],
            out_specs=pl.BlockSpec((tm, E_pad), lambda i, k: (i, 0)),
            scratch_shapes=[pltpu.VMEM((tm, E_pad), jnp.float32)],
        ),
        compiler_params=pltpu.CompilerParams(
            dimension_semantics=("parallel", "arbitrary"),
            vmem_limit_bytes=vmem_limit,
        ),
        cost_estimate=cost,
    )(x2d, w1p, b1p, w2p, b2p)

    out = out2d[:N, :E].astype(x.dtype)
    return out.reshape(batch, seq, E)


def reference_mlp_bf16(x, w1, b1, w2, b2):
    # Same numerics as the kernel: bf16 matmul operands, f32 accumulation,
    # f32 bias add + exact-erf GELU.
    h = jnp.dot(x.astype(jnp.bfloat16), w1.astype(jnp.bfloat16),
                preferred_element_type=jnp.float32) + b1
    h = _gelu_exact(h)
    out = jnp.dot(h.astype(jnp.bfloat16), w2.astype(jnp.bfloat16),
                  preferred_element_type=jnp.float32) + b2
    return out.astype(x.dtype)


def reference_mlp_f32(x, w1, b1, w2, b2):
    h = jnp.dot(x, w1) + b1
    h = _gelu_exact(h)
    return jnp.dot(h, w2) + b2


if __name__ == "__main__":
    # Small shapes consistent with the module (embedding_dim, hidden_dim scaled down).
    batch, seq = 2, 8
    embedding_dim, hidden_dim = 128, 256

    key = jax.random.PRNGKey(0)
    kx, k1, k2, k3, k4 = jax.random.split(key, 5)

    x = jax.random.normal(kx, (batch, seq, embedding_dim), dtype=jnp.float32)

    # PyTorch-Linear-style uniform init: U(-1/sqrt(fan_in), 1/sqrt(fan_in)).
    bound1 = 1.0 / jnp.sqrt(embedding_dim)
    bound2 = 1.0 / jnp.sqrt(hidden_dim)
    w1 = jax.random.uniform(k1, (embedding_dim, hidden_dim), jnp.float32, -bound1, bound1)
    b1 = jax.random.uniform(k2, (hidden_dim,), jnp.float32, -bound1, bound1)
    w2 = jax.random.uniform(k3, (hidden_dim, embedding_dim), jnp.float32, -bound2, bound2)
    b2 = jax.random.uniform(k4, (embedding_dim,), jnp.float32, -bound2, bound2)

    out = mlp_forward(x, w1, b1, w2, b2)
    out = jax.block_until_ready(out)
    assert out.shape == (batch, seq, embedding_dim)

    # Bit-faithful reference for the bf16-operand / f32-accumulate path.
    ref_bf16 = reference_mlp_bf16(x, w1, b1, w2, b2)
    assert jnp.allclose(out, ref_bf16, atol=1e-3, rtol=1e-3), "mismatch vs bf16 reference"

    # Sanity check vs the full-f32 PyTorch-equivalent math (looser tolerance
    # covers bf16 operand rounding).
    ref_f32 = reference_mlp_f32(x, w1, b1, w2, b2)
    assert jnp.allclose(out, ref_f32, atol=5e-2, rtol=5e-2), "mismatch vs f32 reference"

    print("KERNEL_OK")
</pallas_src>

<mosaic_0001>
module attributes {stable_mosaic.version = 11 : i64} {
  func.func @mlp_kernel(%arg0: i32, %arg1: i32, %arg2: memref<16x128xbf16, #tpu.memory_space<vmem>>, %arg3: memref<128x256xbf16, #tpu.memory_space<vmem>>, %arg4: memref<1x256xf32, #tpu.memory_space<vmem>>, %arg5: memref<256x128xbf16, #tpu.memory_space<vmem>>, %arg6: memref<1x128xf32, #tpu.memory_space<vmem>>, %arg7: memref<16x128xf32, #tpu.memory_space<vmem>>, %arg8: memref<16x128xf32, #tpu.memory_space<vmem>>) attributes {dimension_semantics = [#tpu.dimension_semantics<parallel>, #tpu.dimension_semantics<arbitrary>], iteration_bounds = array<i64: 1, 1>, scalar_prefetch = 0 : i64, scratch_operands = 1 : i64, tpu.core_type = #tpu.core_type<tc>, window_params = [{transform_indices = @transform_0, window_bounds = array<i64: 16, 128>}, {transform_indices = @transform_1, window_bounds = array<i64: 128, 256>}, {transform_indices = @transform_2, window_bounds = array<i64: 1, 256>}, {transform_indices = @transform_3, window_bounds = array<i64: 256, 128>}, {pipeline_mode = #tpu.pipeline_mode<synchronous>, transform_indices = @transform_4, window_bounds = array<i64: 1, 128>}, {transform_indices = @transform_5, window_bounds = array<i64: 16, 128>}]} {
    %c0_i32 = arith.constant 0 : i32
    %0 = arith.cmpi eq, %arg1, %c0_i32 : i32
    %1 = arith.extui %0 : i1 to i32
    %c0_i32_0 = arith.constant 0 : i32
    %2 = arith.cmpi ne, %1, %c0_i32_0 : i32
    scf.if %2 {
      %cst_19 = arith.constant 0.000000e+00 : f32
      %28 = vector.broadcast %cst_19 : f32 to vector<16x128xf32>
      %c0_20 = arith.constant 0 : index
      %c0_21 = arith.constant 0 : index
      %29 = vector.load %arg8[%c0_20, %c0_21] : memref<16x128xf32, #tpu.memory_space<vmem>>, vector<16x128xf32>
      tpu.vector_store %arg8[%c0_20, %c0_21], %28 {strides = array<i32>} : memref<16x128xf32, #tpu.memory_space<vmem>>, vector<16x128xf32>,
    } else {
    }
    %c0 = arith.constant 0 : index
    %c0_1 = arith.constant 0 : index
    %3 = vector.load %arg2[%c0, %c0_1] : memref<16x128xbf16, #tpu.memory_space<vmem>>, vector<16x128xbf16>
    %c0_2 = arith.constant 0 : index
    %c0_3 = arith.constant 0 : index
    %4 = vector.load %arg3[%c0_2, %c0_3] : memref<128x256xbf16, #tpu.memory_space<vmem>>, vector<128x256xbf16>
    %cst = arith.constant dense<0.000000e+00> : vector<16x256xf32>
    %5 = tpu.matmul %3, %4, %cst {dimension_numbers = #tpu.dot_dimension_numbers<[1], [0], [0], [1], [0, 0, 1, 1], [], []>} : vector<16x128xbf16>, vector<128x256xbf16>, vector<16x256xf32> -> vector<16x256xf32>
    %c0_4 = arith.constant 0 : index
    %c0_5 = arith.constant 0 : index
    %6 = vector.load %arg4[%c0_4, %c0_5] : memref<1x256xf32, #tpu.memory_space<vmem>>, vector<1x256xf32>
    %7 = vector.broadcast %6 : vector<1x256xf32> to vector<16x256xf32>
    %8 = arith.addf %5, %7 : vector<16x256xf32>
    %cst_6 = arith.constant 5.000000e-01 : f32
    %9 = vector.broadcast %cst_6 : f32 to vector<16x256xf32>
    %10 = arith.mulf %9, %8 : vector<16x256xf32>
    %cst_7 = arith.constant 2.000000e+00 : f32
    %11 = math.sqrt %cst_7 : f32
    %cst_8 = arith.constant 1.000000e+00 : f32
    %12 = arith.divf %cst_8, %11 : f32
    %13 = vector.broadcast %12 : f32 to vector<16x256xf32>
    %14 = arith.mulf %8, %13 : vector<16x256xf32>
    %15 = math.erf %14 : vector<16x256xf32>
    %cst_9 = arith.constant 1.000000e+00 : f32
    %16 = vector.broadcast %cst_9 : f32 to vector<16x256xf32>
    %17 = arith.addf %16, %15 : vector<16x256xf32>
    %18 = arith.mulf %10, %17 : vector<16x256xf32>
    %c0_10 = arith.constant 0 : index
    %c0_11 = arith.constant 0 : index
    %19 = vector.load %arg8[%c0_10, %c0_11] : memref<16x128xf32, #tpu.memory_space<vmem>>, vector<16x128xf32>
    %20 = arith.truncf %18 : vector<16x256xf32> to vector<16x256xbf16>
    %c0_12 = arith.constant 0 : index
    %c0_13 = arith.constant 0 : index
    %21 = vector.load %arg5[%c0_12, %c0_13] : memref<256x128xbf16, #tpu.memory_space<vmem>>, vector<256x128xbf16>
    %cst_14 = arith.constant dense<0.000000e+00> : vector<16x128xf32>
    %22 = tpu.matmul %20, %21, %cst_14 {dimension_numbers = #tpu.dot_dimension_numbers<[1], [0], [0], [1], [0, 0, 1, 1], [], []>} : vector<16x256xbf16>, vector<256x128xbf16>, vector<16x128xf32> -> vector<16x128xf32>
    %23 = arith.addf %19, %22 : vector<16x128xf32>
    %c0_15 = arith.constant 0 : index
    %c0_16 = arith.constant 0 : index
    %24 = vector.load %arg8[%c0_15, %c0_16] : memref<16x128xf32, #tpu.memory_space<vmem>>, vector<16x128xf32>
    tpu.vector_store %arg8[%c0_15, %c0_16], %23 {strides = array<i32>} : memref<16x128xf32, #tpu.memory_space<vmem>>, vector<16x128xf32>,
    %c0_i32_17 = arith.constant 0 : i32
    %25 = arith.cmpi eq, %arg1, %c0_i32_17 : i32
    %26 = arith.extui %25 : i1 to i32
    %c0_i32_18 = arith.constant 0 : i32
    %27 = arith.cmpi ne, %26, %c0_i32_18 : i32
    scf.if %27 {
      %c0_19 = arith.constant 0 : index
      %c0_20 = arith.constant 0 : index
      %28 = vector.load %arg8[%c0_19, %c0_20] : memref<16x128xf32, #tpu.memory_space<vmem>>, vector<16x128xf32>
      %c0_21 = arith.constant 0 : index
      %c0_22 = arith.constant 0 : index
      %29 = vector.load %arg6[%c0_21, %c0_22] : memref<1x128xf32, #tpu.memory_space<vmem>>, vector<1x128xf32>
      %30 = vector.broadcast %29 : vector<1x128xf32> to vector<16x128xf32>
      %31 = arith.addf %28, %30 : vector<16x128xf32>
      %c0_23 = arith.constant 0 : index
      %c0_24 = arith.constant 0 : index
      %32 = vector.load %arg7[%c0_23, %c0_24] : memref<16x128xf32, #tpu.memory_space<vmem>>, vector<16x128xf32>
      tpu.vector_store %arg7[%c0_23, %c0_24], %31 {strides = array<i32>} : memref<16x128xf32, #tpu.memory_space<vmem>>, vector<16x128xf32>,
    } else {
    }
    return
  }
  func.func @transform_0(%arg0: i32, %arg1: i32) -> (i32, i32) {
    %c0_i32 = arith.constant 0 : i32
    %c0_i32_0 = arith.constant 0 : i32
    return %arg0, %c0_i32 : i32, i32
  }
  func.func @transform_1(%arg0: i32, %arg1: i32) -> (i32, i32) {
    %c0_i32 = arith.constant 0 : i32
    %c0_i32_0 = arith.constant 0 : i32
    return %c0_i32, %arg1 : i32, i32
  }
  func.func @transform_2(%arg0: i32, %arg1: i32) -> (i32, i32) {
    %c0_i32 = arith.constant 0 : i32
    %c0_i32_0 = arith.constant 0 : i32
    return %c0_i32, %arg1 : i32, i32
  }
  func.func @transform_3(%arg0: i32, %arg1: i32) -> (i32, i32) {
    %c0_i32 = arith.constant 0 : i32
    %c0_i32_0 = arith.constant 0 : i32
    return %arg1, %c0_i32 : i32, i32
  }
  func.func @transform_4(%arg0: i32, %arg1: i32) -> (i32, i32) {
    %c0_i32 = arith.constant 0 : i32
    %c0_i32_0 = arith.constant 0 : i32
    %c0_i32_1 = arith.constant 0 : i32
    return %c0_i32, %c0_i32_0 : i32, i32
  }
  func.func @transform_5(%arg0: i32, %arg1: i32) -> (i32, i32) {
    %c0_i32 = arith.constant 0 : i32
    %c0_i32_0 = arith.constant 0 : i32
    return %arg0, %c0_i32 : i32, i32
  }
}

</mosaic_0001>

<llo_original>
// kernel: mlp_forward.1
$region0: #{mlp_forward.1}
  #allocation0 [shape = 'u32[]', space=smem, size = 0x4, offset = 0x4, fixed_abs, tag = 'smem constant byte address 0x4 - core index']
  #allocation1 [shape = 'u32[144,128]{1,0:T(1,128)}', space=vmem, size = 0x12000, scoped, tag = 'internal scratch']
  #allocation2 [shape = 'f32[16,128]{1,0:T(8,128)}', space=vmem, size = 0x2000, scoped, tag = 'scratch operand']
  %s0 = inlined_call_operand.vmem [shape: bf16[16,128], index: 0, kind: input, shape index: {}]
  %s1 = inlined_call_operand.vmem [shape: bf16[128,256], index: 1, kind: input, shape index: {}]
  %s2 = inlined_call_operand.vmem [shape: f32[1,256], index: 2, kind: input, shape index: {}]
  %s3 = inlined_call_operand.vmem [shape: bf16[256,128], index: 3, kind: input, shape index: {}]
  %s4 = inlined_call_operand.vmem [shape: f32[1,128], index: 4, kind: input, shape index: {}]
  %s5 = inlined_call_operand.hbm [shape: f32[16,128], index: 5, kind: output, shape index: {}]
  %s6 = sld [smem:[#allocation0]]
  $region38: #{mlp_forward.1} parent=0
    _
  %s8 = ssub.s32 1, %s6
  %s9 = scalar_select 0, %s8, %s6
  $region1: #{mlp_forward.1} parent=0
    #allocation3 [shape = 'u8[8192]{0}', space=vmem, size = 0x2000, scoped, tag = 'output window, operand 0, single buffered']
    #allocation4 [shape = 's32[1]{0}', space=sflag, size = 0x4, scoped, tag = 'scoped memory for mlp_forward.1']
    %10 = vsyncpa [#allocation4], 0
    // Predicated region
    $region2: #{mlp_forward.1} parent=1 // pred_check
      _
    $region3: #{mlp_forward.1} parent=1 // pred_check_branch
      %12 = sbr.rel (0) target = $region5
    $region4: #{mlp_forward.1} parent=1 // pred_region
      _
    $region5: #{mlp_forward.1} parent=1 // pred_fallthru
      _
    // Predicated region
    $region6: #{mlp_forward.1} parent=1 // pred_check
      _
    $region7: #{mlp_forward.1} parent=1 // pred_check_branch
      %14 = sbr.rel (0) target = $region9
    $region8: #{mlp_forward.1} parent=1 // pred_region
      _
    $region9: #{mlp_forward.1} parent=1 // pred_fallthru
      _
    // Predicated region
    $region10: #{mlp_forward.1} parent=1 // pred_check
      _
    $region11: #{mlp_forward.1} parent=1 // pred_check_branch
      %16 = sbr.rel (0) target = $region13
    $region12: #{mlp_forward.1} parent=1 // pred_region
      _
    $region13: #{mlp_forward.1} parent=1 // pred_fallthru
      _
    // Predicated region
    $region14: #{mlp_forward.1} parent=1 // pred_check
      _
    $region15: #{mlp_forward.1} parent=1 // pred_check_branch
      %18 = sbr.rel (0) target = $region17
    $region16: #{mlp_forward.1} parent=1 // pred_region
      _
    $region17: #{mlp_forward.1} parent=1 // pred_fallthru
      _
    // Predicated region
    $region18: #{mlp_forward.1} parent=1 // pred_check
      _
    $region19: #{mlp_forward.1} parent=1 // pred_check_branch
      %20 = sbr.rel (0) target = $region21
    $region20: #{mlp_forward.1} parent=1 // pred_region
      _
    $region21: #{mlp_forward.1} parent=1 // pred_fallthru
      _
    %p22 = scmp.eq.s32.totalorder 0, 0
    // Predicated region
    $region22: #{mlp_forward.1} parent=1 // pred_check
      %p23 = pneg %p22
    $region23: #{mlp_forward.1} parent=1 // pred_check_branch
      %25 = sbr.rel (%p23) target = $region25
    $region24: #{mlp_forward.1} parent=1 // pred_region
      %26 = vst [vmem:[#allocation2] sm:$0xff] 0.0
      %27 = vst [vmem:[#allocation2 + $0x8] sm:$0xff] 0.0
    $region25: #{mlp_forward.1} parent=1 // pred_fallthru
      _
    %v28 = vld [vmem:[%s0] sm:$0xf]
    %v29 = vld [vmem:[%s0 + $0x4] sm:$0xf]
    %v30 = vld [vmem:[%s1] sm:$0xff]
    %v31 = vld [vmem:[%s1 + $0x8] sm:$0xff]
    %v32 = vld [vmem:[%s1 + $0x10] sm:$0xff]
    %v33 = vld [vmem:[%s1 + $0x18] sm:$0xff]
    %v34 = vld [vmem:[%s1 + $0x20] sm:$0xff]
    %v35 = vld [vmem:[%s1 + $0x28] sm:$0xff]
    %v36 = vld [vmem:[%s1 + $0x30] sm:$0xff]
    %v37 = vld [vmem:[%s1 + $0x38] sm:$0xff]
    %v38 = vld [vmem:[%s1 + $0x40] sm:$0xff]
    %v39 = vld [vmem:[%s1 + $0x48] sm:$0xff]
    %v40 = vld [vmem:[%s1 + $0x50] sm:$0xff]
    %v41 = vld [vmem:[%s1 + $0x58] sm:$0xff]
    %v42 = vld [vmem:[%s1 + $0x60] sm:$0xff]
    %v43 = vld [vmem:[%s1 + $0x68] sm:$0xff]
    %v44 = vld [vmem:[%s1 + $0x70] sm:$0xff]
    %v45 = vld [vmem:[%s1 + $0x78] sm:$0xff]
    %v46 = vld [vmem:[%s2] sm:$0x3]
    %v48 = vlaneseq
    %v49 = vshrl.u32 %v48, 7
    %v50 = vsub.s32 0, %v49
    %v51 = vrot.slane %v46, %v50
    %v52 = vlaneseq
    %v53 = vshrl.u32 %v52, 7
    %v54 = vsub.s32 1, %v53
    %v55 = vrot.slane %v46, %v54
    %v60 = vunpack.c.l.b16 %v28
    %v61 = vunpack.c.l.b16 %v29
    %v62 = vpack.c.b16 %v61, %v60
    %v80 = vunpack.c.l.b16 %v30
    %v81 = vunpack.c.h.b16 %v30
    %v82 = vunpack.c.l.b16 %v31
    %v83 = vunpack.c.h.b16 %v31
    %v84 = vunpack.c.l.b16 %v32
    %v85 = vunpack.c.h.b16 %v32
    %v86 = vunpack.c.l.b16 %v33
    %v87 = vunpack.c.h.b16 %v33
    %v88 = vunpack.c.l.b16 %v34
    %v89 = vunpack.c.h.b16 %v34
    %v90 = vunpack.c.l.b16 %v35
    %v91 = vunpack.c.h.b16 %v35
    %v92 = vunpack.c.l.b16 %v36
    %v93 = vunpack.c.h.b16 %v36
    %v94 = vunpack.c.l.b16 %v37
    %v95 = vunpack.c.h.b16 %v37
    %v96 = vunpack.c.l.b16 %v38
    %v97 = vunpack.c.h.b16 %v38
    %v98 = vunpack.c.l.b16 %v39
    %v99 = vunpack.c.h.b16 %v39
    %v100 = vunpack.c.l.b16 %v40
    %v101 = vunpack.c.h.b16 %v40
    %v102 = vunpack.c.l.b16 %v41
    %v103 = vunpack.c.h.b16 %v41
    %v104 = vunpack.c.l.b16 %v42
    %v105 = vunpack.c.h.b16 %v42
    %v106 = vunpack.c.l.b16 %v43
    %v107 = vunpack.c.h.b16 %v43
    %v108 = vunpack.c.l.b16 %v44
    %v109 = vunpack.c.h.b16 %v44
    %v110 = vunpack.c.l.b16 %v45
    %v111 = vunpack.c.h.b16 %v45
    %v112 = vpack.c.b16 %v82, %v80
    %v113 = vpack.c.b16 %v83, %v81
    %v114 = vpack.c.b16 %v86, %v84
    %v115 = vpack.c.b16 %v87, %v85
    %v116 = vpack.c.b16 %v90, %v88
    %v117 = vpack.c.b16 %v91, %v89
    %v118 = vpack.c.b16 %v94, %v92
    %v119 = vpack.c.b16 %v95, %v93
    %v120 = vpack.c.b16 %v98, %v96
    %v121 = vpack.c.b16 %v99, %v97
    %v122 = vpack.c.b16 %v102, %v100
    %v123 = vpack.c.b16 %v103, %v101
    %v124 = vpack.c.b16 %v106, %v104
    %v125 = vpack.c.b16 %v107, %v105
    %v126 = vpack.c.b16 %v110, %v108
    %v127 = vpack.c.b16 %v111, %v109
    %144 = vmatprep.subr.bf16.mxu0 %v127
    %145 = vmatpush1.bf16.msra.mxu0 %v126
    %146 = vmatprep.subr.bf16.mxu0 %v125
    %147 = vmatpush1.bf16.msra.mxu0 %v124
    %148 = vmatprep.subr.bf16.mxu0 %v123
    %149 = vmatpush1.bf16.msra.mxu0 %v122
    %150 = vmatprep.subr.bf16.mxu0 %v121
    %151 = vmatpush1.bf16.msra.mxu0 %v120
    %152 = vmatprep.subr.bf16.mxu0 %v119
    %153 = vmatpush1.bf16.msra.mxu0 %v118
    %154 = vmatprep.subr.bf16.mxu0 %v117
    %155 = vmatpush1.bf16.msra.mxu0 %v116
    %156 = vmatprep.subr.bf16.mxu0 %v115
    %157 = vmatpush1.bf16.msra.mxu0 %v114
    %158 = vmatprep.subr.bf16.mxu0 %v113
    %159 = vmatpush1.bf16.msra.mxu0 %v112
    %160 = vmatprep.subr.bf16.mxu0 0
    %161 = vmatpush2.bf16.msra.mxu0 0
    %162 = vmatprep.subr.bf16.mxu0 0
    %163 = vmatpush2.bf16.msra.mxu0 0
    %164 = vmatprep.subr.bf16.mxu0 0
    %165 = vmatpush2.bf16.msra.mxu0 0
    %166 = vmatprep.subr.bf16.mxu0 0
    %167 = vmatpush2.bf16.msra.mxu0 0
    %168 = vmatprep.subr.bf16.mxu0 0
    %169 = vmatpush2.bf16.msra.mxu0 0
    %170 = vmatprep.subr.bf16.mxu0 0
    %171 = vmatpush2.bf16.msra.mxu0 0
    %172 = vmatprep.subr.bf16.mxu0 0
    %173 = vmatpush2.bf16.msra.mxu0 0
    %174 = vmatprep.subr.bf16.mxu0 0
    %175 = vmatpush2.bf16.msra.mxu0 0
    %176 = vmatprep.mubr.bf16.mxu0 0
    %177 = vmatmul.mubr.bf16.gmra.mxu0 %v62
    %v178 = vpop.f32.mrf.mxu0
    %v179 = vadd.f32 %v51, %v178
    %v180 = vpop.f32.mrf.mxu0
    %v181 = vadd.f32 %v55, %v180
    %v182 = vpop.f32.mrf.mxu0
    %v183 = vadd.f32 %v51, %v182
    %v184 = vpop.f32.mrf.mxu0
    %v185 = vadd.f32 %v55, %v184
    %186 = vdwg.mxu0
    %v187 = vmul.f32 %v179, 0.5
    %v188 = vmul.f32 %v181, 0.5
    %v189 = vmul.f32 %v183, 0.5
    %v190 = vmul.f32 %v185, 0.5
    %v191 = vmul.f32 %v179, 0.70710677
    %v192 = vmul.f32 %v181, 0.70710677
    %v193 = vmul.f32 %v183, 0.70710677
    %v194 = vmul.f32 %v185, 0.70710677
    %v195 = verf.f32.pop %v191
    %v196 = verf.f32.pop %v192
    %v197 = verf.f32.pop %v193
    %v198 = verf.f32.pop %v194
    %v199 = vadd.f32 %v195, 1.0
    %v200 = vadd.f32 %v196, 1.0
    %v201 = vadd.f32 %v197, 1.0
    %v202 = vadd.f32 %v198, 1.0
    %v203 = vmul.f32 %v187, %v199
    %v204 = vmul.f32 %v188, %v200
    %v205 = vmul.f32 %v189, %v201
    %v206 = vmul.f32 %v190, %v202
    %v207 = vld [vmem:[#allocation2] sm:$0xff]
    %v208 = vld [vmem:[#allocation2 + $0x8] sm:$0xff]
    %v209 = vpack.c.bf16 %v205, %v203
    %v210 = vpack.c.bf16 %v206, %v204
    %v211 = vld [vmem:[%s3] sm:$0xf]
    %v212 = vld [vmem:[%s3 + $0x4] sm:$0xf]
    %v213 = vld [vmem:[%s3 + $0x8] sm:$0xf]
    %v214 = vld [vmem:[%s3 + $0xc] sm:$0xf]
    %v215 = vld [vmem:[%s3 + $0x10] sm:$0xf]
    %v216 = vld [vmem:[%s3 + $0x14] sm:$0xf]
    %v217 = vld [vmem:[%s3 + $0x18] sm:$0xf]
    %v218 = vld [vmem:[%s3 + $0x1c] sm:$0xf]
    %v219 = vld [vmem:[%s3 + $0x20] sm:$0xf]
    %v220 = vld [vmem:[%s3 + $0x24] sm:$0xf]
    %v221 = vld [vmem:[%s3 + $0x28] sm:$0xf]
    %v222 = vld [vmem:[%s3 + $0x2c] sm:$0xf]
    %v223 = vld [vmem:[%s3 + $0x30] sm:$0xf]
    %v224 = vld [vmem:[%s3 + $0x34] sm:$0xf]
    %v225 = vld [vmem:[%s3 + $0x38] sm:$0xf]
    %v226 = vld [vmem:[%s3 + $0x3c] sm:$0xf]
    %v227 = vld [vmem:[%s3 + $0x40] sm:$0xf]
    %v228 = vld [vmem:[%s3 + $0x44] sm:$0xf]
    %v229 = vld [vmem:[%s3 + $0x48] sm:$0xf]
    %v230 = vld [vmem:[%s3 + $0x4c] sm:$0xf]
    %v231 = vld [vmem:[%s3 + $0x50] sm:$0xf]
    %v232 = vld [vmem:[%s3 + $0x54] sm:$0xf]
    %v233 = vld [vmem:[%s3 + $0x58] sm:$0xf]
    %v234 = vld [vmem:[%s3 + $0x5c] sm:$0xf]
    %v235 = vld [vmem:[%s3 + $0x60] sm:$0xf]
    %v236 = vld [vmem:[%s3 + $0x64] sm:$0xf]
    %v237 = vld [vmem:[%s3 + $0x68] sm:$0xf]
    %v238 = vld [vmem:[%s3 + $0x6c] sm:$0xf]
    %v239 = vld [vmem:[%s3 + $0x70] sm:$0xf]
    %v240 = vld [vmem:[%s3 + $0x74] sm:$0xf]
    %v241 = vld [vmem:[%s3 + $0x78] sm:$0xf]
    %v242 = vld [vmem:[%s3 + $0x7c] sm:$0xf]
    %v275 = vunpack.c.l.b16 %v211
    %v276 = vunpack.c.l.b16 %v212
    %v277 = vunpack.c.l.b16 %v213
    %v278 = vunpack.c.l.b16 %v214
    %v279 = vunpack.c.l.b16 %v215
    %v280 = vunpack.c.l.b16 %v216
    %v281 = vunpack.c.l.b16 %v217
    %v282 = vunpack.c.l.b16 %v218
    %v283 = vunpack.c.l.b16 %v219
    %v284 = vunpack.c.l.b16 %v220
    %v285 = vunpack.c.l.b16 %v221
    %v286 = vunpack.c.l.b16 %v222
    %v287 = vunpack.c.l.b16 %v223
    %v288 = vunpack.c.l.b16 %v224
    %v289 = vunpack.c.l.b16 %v225
    %v290 = vunpack.c.l.b16 %v226
    %v291 = vunpack.c.l.b16 %v227
    %v292 = vunpack.c.l.b16 %v228
    %v293 = vunpack.c.l.b16 %v229
    %v294 = vunpack.c.l.b16 %v230
    %v295 = vunpack.c.l.b16 %v231
    %v296 = vunpack.c.l.b16 %v232
    %v297 = vunpack.c.l.b16 %v233
    %v298 = vunpack.c.l.b16 %v234
    %v299 = vunpack.c.l.b16 %v235
    %v300 = vunpack.c.l.b16 %v236
    %v301 = vunpack.c.l.b16 %v237
    %v302 = vunpack.c.l.b16 %v238
    %v303 = vunpack.c.l.b16 %v239
    %v304 = vunpack.c.l.b16 %v240
    %v305 = vunpack.c.l.b16 %v241
    %v306 = vunpack.c.l.b16 %v242
    %v307 = vpack.c.b16 %v276, %v275
    %v308 = vpack.c.b16 %v278, %v277
    %v309 = vpack.c.b16 %v280, %v279
    %v310 = vpack.c.b16 %v282, %v281
    %v311 = vpack.c.b16 %v284, %v283
    %v312 = vpack.c.b16 %v286, %v285
    %v313 = vpack.c.b16 %v288, %v287
    %v314 = vpack.c.b16 %v290, %v289
    %v315 = vpack.c.b16 %v292, %v291
    %v316 = vpack.c.b16 %v294, %v293
    %v317 = vpack.c.b16 %v296, %v295
    %v318 = vpack.c.b16 %v298, %v297
    %v319 = vpack.c.b16 %v300, %v299
    %v320 = vpack.c.b16 %v302, %v301
    %v321 = vpack.c.b16 %v304, %v303
    %v322 = vpack.c.b16 %v306, %v305
    %339 = vmatprep.subr.bf16.mxu0 0
    %340 = vmatpush1.bf16.msra.mxu0 %v314
    %341 = vmatprep.subr.bf16.mxu0 0
    %342 = vmatpush1.bf16.msra.mxu0 %v313
    %343 = vmatprep.subr.bf16.mxu0 0
    %344 = vmatpush1.bf16.msra.mxu0 %v312
    %345 = vmatprep.subr.bf16.mxu0 0
    %346 = vmatpush1.bf16.msra.mxu0 %v311
    %347 = vmatprep.subr.bf16.mxu0 0
    %348 = vmatpush1.bf16.msra.mxu0 %v310
    %349 = vmatprep.subr.bf16.mxu0 0
    %350 = vmatpush1.bf16.msra.mxu0 %v309
    %351 = vmatprep.subr.bf16.mxu0 0
    %352 = vmatpush1.bf16.msra.mxu0 %v308
    %353 = vmatprep.subr.bf16.mxu0 0
    %354 = vmatpush1.bf16.msra.mxu0 %v307
    %355 = vmatprep.subr.bf16.mxu0 0
    %356 = vmatpush2.bf16.msra.mxu0 %v322
    %357 = vmatprep.subr.bf16.mxu0 0
    %358 = vmatpush2.bf16.msra.mxu0 %v321
    %359 = vmatprep.subr.bf16.mxu0 0
    %360 = vmatpush2.bf16.msra.mxu0 %v320
    %361 = vmatprep.subr.bf16.mxu0 0
    %362 = vmatpush2.bf16.msra.mxu0 %v319
    %363 = vmatprep.subr.bf16.mxu0 0
    %364 = vmatpush2.bf16.msra.mxu0 %v318
    %365 = vmatprep.subr.bf16.mxu0 0
    %366 = vmatpush2.bf16.msra.mxu0 %v317
    %367 = vmatprep.subr.bf16.mxu0 0
    %368 = vmatpush2.bf16.msra.mxu0 %v316
    %369 = vmatprep.subr.bf16.mxu0 0
    %370 = vmatpush2.bf16.msra.mxu0 %v315
    %371 = vmatprep.mubr.bf16.mxu0 %v210
    %372 = vmatmul.mubr.bf16.gmra.mxu0 %v209
    %v373 = vpop.f32.mrf.mxu0
    %v374 = vadd.f32 0.0, %v373
    %v375 = vpop.f32.mrf.mxu0
    %v376 = vpop.f32.mrf.mxu0
    %v377 = vadd.f32 0.0, %v376
    %v378 = vpop.f32.mrf.mxu0
    %379 = vdwg.mxu0
    %v380 = vadd.f32 %v207, %v374
    %v381 = vadd.f32 %v208, %v377
    %382 = vst [vmem:[#allocation2] sm:$0xff] %v380
    %383 = vst [vmem:[#allocation2 + $0x8] sm:$0xff] %v381
    // Predicated region
    $region26: #{mlp_forward.1} parent=1 // pred_check
      %p384 = pneg %p22
    $region27: #{mlp_forward.1} parent=1 // pred_check_branch
      %386 = sbr.rel (%p384) target = $region29
    $region28: #{mlp_forward.1} parent=1 // pred_region
      %v387 = vld [vmem:[#allocation2] sm:$0xff]
      %v388 = vld [vmem:[#allocation2 + $0x8] sm:$0xff]
      %v389 = vld [vmem:[%s4] sm:$0x1]
      %v391 = vlaneseq
      %v392 = vshrl.u32 %v391, 7
      %v393 = vsub.s32 0, %v392
      %v394 = vrot.slane %v389, %v393
      %v396 = vadd.f32 %v387, %v394
      %v397 = vadd.f32 %v388, %v394
      %398 = vst [vmem:[#allocation3] sm:$0xff] %v396
      %399 = vst [vmem:[#allocation3 + $0x8] sm:$0xff] %v397
    $region29: #{mlp_forward.1} parent=1 // pred_fallthru
      _
    // Predicated region
    $region30: #{mlp_forward.1} parent=1 // pred_check
      _
    $region31: #{mlp_forward.1} parent=1 // pred_check_branch
      %401 = sbr.rel (0) target = $region33
    $region32: #{mlp_forward.1} parent=1 // pred_region
      %s403 = ssub.s32 256, 256
      %404 = vsyncadd [#allocation4], %s403
      %s405 = sshll.u32 [#allocation3], 4
      %s406 = int_to_ptr.vmem [resolvable:$true] %s405
      %411 = dma.vmem_to_hbm [thread:$0]  %s406, 256, %s5, [#allocation4], 128, 128, 8
    $region33: #{mlp_forward.1} parent=1 // pred_fallthru
      _
    // Predicated region
    $region34: #{mlp_forward.1} parent=1 // pred_check
      _
    $region35: #{mlp_forward.1} parent=1 // pred_check_branch
      %413 = sbr.rel (0) target = $region37
    $region36: #{mlp_forward.1} parent=1 // pred_region
      %414 = dma.done [#allocation4], 256
    $region37: #{mlp_forward.1} parent=1 // pred_fallthru
      _
    %415 = vsyncpa [#allocation4], 1

</llo_original>
